<compile_context>
chip_gen: v7x
topology: tpu7x:2x2x1
jax: 0.10.0
libtpu: 0.0.40
codegen_flags: <defaults>
</compile_context>

<pallas_src>
import jax
import jax.numpy as jnp
from jax import lax
from jax.experimental import pallas as pl
from jax.experimental.pallas import tpu as pltpu

# Small synthetic shapes consistent with the module's forward (lane-dense E/H).
B, S, E, H, VOCAB = 2, 8, 128, 128, 512


def fused_sentence_embedding_kernel(ids_ref, pool_ref, table_hbm, w_ref, b_ref,
                                    o_ref, xg_ref, gsem):
    # Static shapes for this batch tile.
    n_tok = xg_ref.shape[0]                     # tb * S tokens in this tile
    base = pl.program_id(0) * n_tok             # offset into the prefetched id list

    # ---- 1) Row gather: DMA each token's embedding row HBM -> VMEM scratch. ----
    # ids live in SMEM (scalar prefetch); the f32 table never enters VMEM wholesale.
    @pl.loop(0, n_tok)
    def _(t):
        row = ids_ref[base + t]
        pltpu.make_async_copy(table_hbm.at[pl.ds(row, 1), :],
                              xg_ref.at[pl.ds(t, 1), :],
                              gsem.at[t]).start()

    @pl.loop(0, n_tok)
    def _(t):
        pltpu.make_async_copy(table_hbm.at[pl.ds(0, 1), :],
                              xg_ref.at[pl.ds(t, 1), :],
                              gsem.at[t]).wait()

    # ---- 2) Stand-in encoder: linear + tanh (bf16 MXU operands, f32 accumulate). ----
    x = xg_ref[...].astype(jnp.bfloat16)                                    # (n, E)
    h = jnp.dot(x, w_ref[...], preferred_element_type=jnp.float32) + b_ref[...]
    tok = jnp.tanh(h).astype(jnp.bfloat16)                                  # (n, H)

    # ---- 3) Masked sum pooling on the MXU with the wrapper-built block-diag selector. ----
    # pool_ref[b, j] = mask[b, s] if token j belongs to row b else 0 (exact in bf16).
    summed = jnp.dot(pool_ref[...], tok, preferred_element_type=jnp.float32)  # (tb, H) f32

    # ---- 4) F.normalize(p=2, dim=1): the 1/count mean scale cancels here, so it is omitted.
    sumsq = jnp.sum(summed * summed, axis=1, keepdims=True)                 # (tb, 1)
    o_ref[...] = (summed * lax.rsqrt(jnp.maximum(sumsq, 1e-24))).astype(o_ref.dtype)


def sentence_embedding(input_ids, attention_mask, emb_table, w, b):
    bsz, seq = input_ids.shape
    vocab, e = emb_table.shape
    hid = w.shape[1]

    # One batch tile covers the whole (toy) batch -> a single grid step, no remainder tile.
    # TODO(synk): at real shapes pick tb as a multiple of 8 with bsz % tb == 0 so the grid
    #             has >=2 "parallel" steps (v7x 2 TensorCores) and no padded tail rows.
    tb = bsz
    grid = (pl.cdiv(bsz, tb),)
    n_tok = tb * seq

    # Wrapper-side plumbing (cheap XLA ops, done once):
    ids_flat = input_ids.reshape(bsz * seq).astype(jnp.int32)        # -> SMEM via prefetch
    mask_f = attention_mask.astype(jnp.float32)                       # (B, S)
    eye = jnp.eye(bsz, dtype=jnp.float32)
    pool = (eye[:, :, None] * mask_f[None, :, :]).reshape(bsz, bsz * seq)
    pool = pool.astype(jnp.bfloat16)                                   # 0/1 mask: exact in bf16
    w_bf16 = w.astype(jnp.bfloat16)                                    # bf16 MXU operand

    return pl.pallas_call(
        fused_sentence_embedding_kernel,
        out_shape=jax.ShapeDtypeStruct((bsz, hid), jnp.float32),
        grid_spec=pltpu.PrefetchScalarGridSpec(
            num_scalar_prefetch=1,                      # ids -> SMEM, fed to index_maps too
            grid=grid,
            in_specs=[
                # block-diagonal pooling selector: diagonal block (i, i) per batch tile
                pl.BlockSpec((tb, n_tok), lambda i, ids: (i, i)),
                # vocab table stays in HBM; rows are DMA-gathered in-kernel
                pl.BlockSpec(memory_space=pl.ANY),
                pl.BlockSpec((e, hid), lambda i, ids: (0, 0)),   # encoder weight (bf16)
                pl.BlockSpec((1, hid), lambda i, ids: (0, 0)),   # encoder bias   (f32)
            ],
            out_specs=pl.BlockSpec((tb, hid), lambda i, ids: (i, 0)),  # lane-dense (B, H) slab
            scratch_shapes=[
                pltpu.VMEM((n_tok, e), jnp.float32),     # gathered embedding rows
                pltpu.SemaphoreType.DMA((n_tok,)),       # one sem per in-flight row DMA
            ],
        ),
        compiler_params=pltpu.CompilerParams(
            dimension_semantics=("parallel",)),
    )(ids_flat, pool, emb_table, w_bf16, b)


def reference(input_ids, attention_mask, emb_table, w, b):
    # Pure-JAX reference with the same bf16-operand / f32-accumulate matmul policy,
    # but the module's literal mean-pool-then-normalize order.
    x = emb_table.astype(jnp.bfloat16)[input_ids]                           # (B, S, E)
    h = jnp.einsum("bse,eh->bsh", x, w.astype(jnp.bfloat16),
                   preferred_element_type=jnp.float32) + b[None, :, :]
    tok = jnp.tanh(h).astype(jnp.bfloat16)                                  # (B, S, H)
    m = attention_mask.astype(jnp.float32)[..., None]
    summed = jnp.sum(tok.astype(jnp.float32) * m, axis=1)                   # (B, H)
    emb = summed / jnp.maximum(jnp.sum(m, axis=1), 1e-9)
    nrm = jnp.sqrt(jnp.sum(emb * emb, axis=1, keepdims=True))
    return emb / jnp.maximum(nrm, 1e-12)


if __name__ == "__main__":
    key = jax.random.PRNGKey(0)
    k1, k2, k3, k4 = jax.random.split(key, 4)
    emb_table = 0.02 * jax.random.normal(k1, (VOCAB, E), jnp.float32)
    w = 0.05 * jax.random.normal(k2, (E, H), jnp.float32)
    b = 0.01 * jax.random.normal(k3, (1, H), jnp.float32)
    input_ids = jax.random.randint(k4, (B, S), 0, VOCAB)
    attention_mask = jnp.array(
        [[1, 1, 1, 1, 1, 1, 0, 0],
         [1, 1, 1, 1, 0, 0, 0, 0]], dtype=jnp.int32)

    out = sentence_embedding(input_ids, attention_mask, emb_table, w, b)
    jax.block_until_ready(out)

    ref = reference(input_ids, attention_mask, emb_table, w, b)
    assert out.shape == (B, H)
    assert jnp.allclose(out, ref, atol=2e-3, rtol=2e-3), \
        float(jnp.max(jnp.abs(out - ref)))

    print("KERNEL_OK")
</pallas_src>

<mosaic_0001>
module attributes {stable_mosaic.version = 11 : i64} {
  func.func @fused_sentence_embedding_kernel(%arg0: i32, %arg1: memref<16xi32, #tpu.memory_space<smem>>, %arg2: memref<2x16xbf16, #tpu.memory_space<vmem>>, %arg3: memref<512x128xf32, #tpu.memory_space<any>>, %arg4: memref<128x128xbf16, #tpu.memory_space<vmem>>, %arg5: memref<1x128xf32, #tpu.memory_space<vmem>>, %arg6: memref<2x128xf32, #tpu.memory_space<vmem>>, %arg7: memref<16x128xf32, #tpu.memory_space<vmem>>, %arg8: memref<16x!tpu.dma_semaphore, #tpu.memory_space<semaphore_mem>>) attributes {dimension_semantics = [#tpu.dimension_semantics<parallel>], iteration_bounds = array<i64: 1>, scalar_prefetch = 1 : i64, scratch_operands = 2 : i64, tpu.core_type = #tpu.core_type<tc>, window_params = [{transform_indices = @transform_0, window_bounds = array<i64: 2, 16>}, {}, {pipeline_mode = #tpu.pipeline_mode<synchronous>, transform_indices = @transform_2, window_bounds = array<i64: 128, 128>}, {pipeline_mode = #tpu.pipeline_mode<synchronous>, transform_indices = @transform_3, window_bounds = array<i64: 1, 128>}, {transform_indices = @transform_4, window_bounds = array<i64: 2, 128>}]} {
    %c16_i32 = arith.constant 16 : i32
    %0 = arith.muli %arg0, %c16_i32 : i32
    %c0_i32 = arith.constant 0 : i32
    %c16_i32_0 = arith.constant 16 : i32
    %1 = arith.addi %c0_i32, %c16_i32_0 : i32
    %c1_i32 = arith.constant 1 : i32
    scf.for %arg9 = %c0_i32 to %1 step %c1_i32  : i32 {
      %c1_i32_18 = arith.constant 1 : i32
      %23 = arith.muli %arg9, %c1_i32_18 : i32
      %c0_i32_19 = arith.constant 0 : i32
      %24 = arith.addi %c0_i32_19, %23 : i32
      %25 = arith.addi %0, %24 : i32
      %26 = arith.index_cast %25 : i32 to index
      %27 = memref.load %arg1[%26] : memref<16xi32, #tpu.memory_space<smem>>
      %c0_i32_20 = arith.constant 0 : i32
      %28 = tpu.memref_slice %arg3[%27, %c0_i32_20] : memref<512x128xf32, #tpu.memory_space<any>> -> memref<1x128xf32, #tpu.memory_space<any>>
      %c0_i32_21 = arith.constant 0 : i32
      %29 = tpu.memref_slice %arg7[%24, %c0_i32_21] : memref<16x128xf32, #tpu.memory_space<vmem>> -> memref<1x128xf32, #tpu.memory_space<vmem>>
      %30 = tpu.memref_slice %arg8[%24] : memref<16x!tpu.dma_semaphore, #tpu.memory_space<semaphore_mem>> -> memref<1x!tpu.dma_semaphore, #tpu.memory_space<semaphore_mem>>
      %31 = tpu.memref_squeeze %30 : memref<1x!tpu.dma_semaphore, #tpu.memory_space<semaphore_mem>> -> memref<!tpu.dma_semaphore, #tpu.memory_space<semaphore_mem>>
      tpu.enqueue_dma source(%28 : memref<1x128xf32, #tpu.memory_space<any>>) target(%29 : memref<1x128xf32, #tpu.memory_space<vmem>>) target_semaphore(%31 : memref<!tpu.dma_semaphore, #tpu.memory_space<semaphore_mem>>)
    }
    %c16_i32_1 = arith.constant 16 : i32
    %c0_i32_2 = arith.constant 0 : i32
    %c16_i32_3 = arith.constant 16 : i32
    %2 = arith.addi %c0_i32_2, %c16_i32_3 : i32
    %c1_i32_4 = arith.constant 1 : i32
    scf.for %arg9 = %c0_i32_2 to %2 step %c1_i32_4  : i32 {
      %c1_i32_18 = arith.constant 1 : i32
      %23 = arith.muli %arg9, %c1_i32_18 : i32
      %c0_i32_19 = arith.constant 0 : i32
      %24 = arith.addi %c0_i32_19, %23 : i32
      %c0_i32_20 = arith.constant 0 : i32
      %c0_i32_21 = arith.constant 0 : i32
      %25 = tpu.memref_slice %arg3[%c0_i32_20, %c0_i32_21] : memref<512x128xf32, #tpu.memory_space<any>> -> memref<1x128xf32, #tpu.memory_space<any>>
      %c0_i32_22 = arith.constant 0 : i32
      %26 = tpu.memref_slice %arg7[%24, %c0_i32_22] : memref<16x128xf32, #tpu.memory_space<vmem>> -> memref<1x128xf32, #tpu.memory_space<vmem>>
      %27 = tpu.memref_slice %arg8[%24] : memref<16x!tpu.dma_semaphore, #tpu.memory_space<semaphore_mem>> -> memref<1x!tpu.dma_semaphore, #tpu.memory_space<semaphore_mem>>
      %28 = tpu.memref_squeeze %27 : memref<1x!tpu.dma_semaphore, #tpu.memory_space<semaphore_mem>> -> memref<!tpu.dma_semaphore, #tpu.memory_space<semaphore_mem>>
      tpu.wait_dma2 semaphore(%28 : memref<!tpu.dma_semaphore, #tpu.memory_space<semaphore_mem>>) src(%25 : memref<1x128xf32, #tpu.memory_space<any>>) dst(%26 : memref<1x128xf32, #tpu.memory_space<vmem>>)
    }
    %c16_i32_5 = arith.constant 16 : i32
    %c0 = arith.constant 0 : index
    %c0_6 = arith.constant 0 : index
    %3 = vector.load %arg7[%c0, %c0_6] : memref<16x128xf32, #tpu.memory_space<vmem>>, vector<16x128xf32>
    %4 = arith.truncf %3 : vector<16x128xf32> to vector<16x128xbf16>
    %c0_7 = arith.constant 0 : index
    %c0_8 = arith.constant 0 : index
    %5 = vector.load %arg4[%c0_7, %c0_8] : memref<128x128xbf16, #tpu.memory_space<vmem>>, vector<128x128xbf16>
    %cst = arith.constant dense<0.000000e+00> : vector<16x128xf32>
    %6 = tpu.matmul %4, %5, %cst {dimension_numbers = #tpu.dot_dimension_numbers<[1], [0], [0], [1], [0, 0, 1, 1], [], []>} : vector<16x128xbf16>, vector<128x128xbf16>, vector<16x128xf32> -> vector<16x128xf32>
    %c0_9 = arith.constant 0 : index
    %c0_10 = arith.constant 0 : index
    %7 = vector.load %arg5[%c0_9, %c0_10] : memref<1x128xf32, #tpu.memory_space<vmem>>, vector<1x128xf32>
    %8 = vector.broadcast %7 : vector<1x128xf32> to vector<16x128xf32>
    %9 = arith.addf %6, %8 : vector<16x128xf32>
    %10 = math.tanh %9 : vector<16x128xf32>
    %11 = arith.truncf %10 : vector<16x128xf32> to vector<16x128xbf16>
    %c0_11 = arith.constant 0 : index
    %c0_12 = arith.constant 0 : index
    %12 = vector.load %arg2[%c0_11, %c0_12] : memref<2x16xbf16, #tpu.memory_space<vmem>>, vector<2x16xbf16>
    %cst_13 = arith.constant dense<0.000000e+00> : vector<2x128xf32>
    %13 = tpu.matmul %12, %11, %cst_13 {dimension_numbers = #tpu.dot_dimension_numbers<[1], [0], [0], [1], [0, 0, 1, 1], [], []>} : vector<2x16xbf16>, vector<16x128xbf16>, vector<2x128xf32> -> vector<2x128xf32>
    %14 = arith.mulf %13, %13 : vector<2x128xf32>
    %cst_14 = arith.constant dense<0.000000e+00> : vector<2xf32>
    %15 = vector.multi_reduction <add>, %14, %cst_14 [1] : vector<2x128xf32> to vector<2xf32>
    %16 = vector.shape_cast %15 : vector<2xf32> to vector<2x1xf32>
    %cst_15 = arith.constant 1.000000e-24 : f32
    %17 = vector.broadcast %cst_15 : f32 to vector<2x1xf32>
    %18 = arith.maximumf %16, %17 : vector<2x1xf32>
    %19 = math.rsqrt %18 : vector<2x1xf32>
    %20 = vector.broadcast %19 : vector<2x1xf32> to vector<2x128xf32>
    %21 = arith.mulf %13, %20 : vector<2x128xf32>
    %c0_16 = arith.constant 0 : index
    %c0_17 = arith.constant 0 : index
    %22 = vector.load %arg6[%c0_16, %c0_17] : memref<2x128xf32, #tpu.memory_space<vmem>>, vector<2x128xf32>
    tpu.vector_store %arg6[%c0_16, %c0_17], %21 {strides = array<i32>} : memref<2x128xf32, #tpu.memory_space<vmem>>, vector<2x128xf32>,
    return
  }
  func.func @transform_0(%arg0: i32, %arg1: memref<16xi32, #tpu.memory_space<smem>>) -> (i32, i32) {
    %c0_i32 = arith.constant 0 : i32
    return %arg0, %arg0 : i32, i32
  }
  func.func @transform_2(%arg0: i32, %arg1: memref<16xi32, #tpu.memory_space<smem>>) -> (i32, i32) {
    %c0_i32 = arith.constant 0 : i32
    %c0_i32_0 = arith.constant 0 : i32
    %c0_i32_1 = arith.constant 0 : i32
    return %c0_i32, %c0_i32_0 : i32, i32
  }
  func.func @transform_3(%arg0: i32, %arg1: memref<16xi32, #tpu.memory_space<smem>>) -> (i32, i32) {
    %c0_i32 = arith.constant 0 : i32
    %c0_i32_0 = arith.constant 0 : i32
    %c0_i32_1 = arith.constant 0 : i32
    return %c0_i32, %c0_i32_0 : i32, i32
  }
  func.func @transform_4(%arg0: i32, %arg1: memref<16xi32, #tpu.memory_space<smem>>) -> (i32, i32) {
    %c0_i32 = arith.constant 0 : i32
    %c0_i32_0 = arith.constant 0 : i32
    return %arg0, %c0_i32 : i32, i32
  }
}

</mosaic_0001>

<llo_original>
// kernel: tpu_custom_call.1
$region0: #{tpu_custom_call.1}
  #allocation0 [shape = 'u32[]', space=smem, size = 0x4, offset = 0x4, fixed_abs, tag = 'smem constant byte address 0x4 - core index']
  #allocation1 [shape = 'u32[144,128]{1,0:T(1,128)}', space=vmem, size = 0x12000, scoped, tag = 'internal scratch']
  #allocation2 [shape = 'f32[16,128]{1,0:T(8,128)}', space=vmem, size = 0x2000, scoped, tag = 'scratch operand']
  #allocation3 [shape = 's32[16]{0}', space=sflag, size = 0x40, scoped, tag = 'scratch operand']
  #allocation4 [shape = 's32[1]{0}', space=sflag, size = 0x4, scoped, tag = 'scoped memory for tpu_custom_call.1']
  #allocation5 [shape = 'u8[512]{0}', space=smem, size = 0x200, scoped, tag = 'prefetched SMEM operand 0']
  #allocation10 [shape = 's32[]', space=sflag, size = 0x4, offset = 0, fixed_abs, tag = 'sflag constant byte address 0x0 - dummy sync flag']
  #allocation11 [shape = 's32[]', space=sflag, size = 0x4, offset = 0, fixed_abs, tag = 'sflag constant byte address 0x0 - dummy sync flag']
  #allocation12 [shape = 'u32[]', space=smem, size = 0x4, offset = 0x44, fixed_abs, tag = 'smem constant byte address 0x44 - assertion arg 0']
  #allocation13 [shape = 'u32[]', space=smem, size = 0x4, offset = 0x48, fixed_abs, tag = 'smem constant byte address 0x48 - assertion arg 1']
  %s0 = inlined_call_operand.hbm [shape: s32[16], index: 0, kind: input, shape index: {}]
  %s1 = inlined_call_operand.vmem [shape: bf16[2,16], index: 1, kind: input, shape index: {}]
  %s2 = inlined_call_operand.hbm [shape: f32[512,128], index: 2, kind: input, shape index: {}]
  %s3 = inlined_call_operand.hbm [shape: bf16[128,128], index: 3, kind: input, shape index: {}]
  %s4 = inlined_call_operand.vmem [shape: f32[1,128], index: 4, kind: input, shape index: {}]
  %s5 = inlined_call_operand.hbm [shape: f32[2,128], index: 5, kind: output, shape index: {}]
  %s6 = sld [smem:[#allocation0]]
  $region44: #{tpu_custom_call.1} parent=0
    _
  %s8 = ssub.s32 1, %s6
  %s9 = scalar_select 0, %s8, %s6
  %11 = dma.hbm_to_smem %s0, 16, [#allocation5], [#allocation4]
  %12 = dma.done [#allocation4], 16
  %13 = sfence
  $region1: #{tpu_custom_call.1} parent=0
    #allocation6 [shape = 'u8[32768]{0}', space=vmem, size = 0x8000, scoped, tag = 'input window, operand 3, single buffered']
    #allocation7 [shape = 's32[1]{0}', space=sflag, size = 0x4, scoped, tag = 'scoped memory for tpu_custom_call.1']
    #allocation8 [shape = 's32[1]{0}', space=sflag, size = 0x4, scoped, tag = 'scoped memory for tpu_custom_call.1']
    #allocation9 [shape = 'u8[1024]{0}', space=vmem, size = 0x400, scoped, tag = 'output window, operand 0, single buffered']
    %14 = vsyncpa [#allocation7], 0
    %15 = vsyncpa [#allocation8], 0
    // Predicated region
    $region2: #{tpu_custom_call.1} parent=1 // pred_check
      _
    $region3: #{tpu_custom_call.1} parent=1 // pred_check_branch
      %17 = sbr.rel (0) target = $region5
    $region4: #{tpu_custom_call.1} parent=1 // pred_region
      _
    $region5: #{tpu_custom_call.1} parent=1 // pred_fallthru
      _
    // Predicated region
    $region6: #{tpu_custom_call.1} parent=1 // pred_check
      _
    $region7: #{tpu_custom_call.1} parent=1 // pred_check_branch
      %19 = sbr.rel (0) target = $region9
    $region8: #{tpu_custom_call.1} parent=1 // pred_region
      %s21 = ssub.s32 1024, 1024
      %22 = vsyncadd [#allocation7], %s21
      %s23 = sshll.u32 [#allocation6], 4
      %s24 = int_to_ptr.vmem [resolvable:$true] %s23
      %29 = dma.hbm_to_vmem [thread:$0]  %s3, 1024, %s24, [#allocation7], 64, 64, 4
    $region9: #{tpu_custom_call.1} parent=1 // pred_fallthru
      _
    // Predicated region
    $region10: #{tpu_custom_call.1} parent=1 // pred_check
      _
    $region11: #{tpu_custom_call.1} parent=1 // pred_check_branch
      %31 = sbr.rel (0) target = $region13
    $region12: #{tpu_custom_call.1} parent=1 // pred_region
      _
    $region13: #{tpu_custom_call.1} parent=1 // pred_fallthru
      _
    // Predicated region
    $region14: #{tpu_custom_call.1} parent=1 // pred_check
      _
    $region15: #{tpu_custom_call.1} parent=1 // pred_check_branch
      %33 = sbr.rel (0) target = $region17
    $region16: #{tpu_custom_call.1} parent=1 // pred_region
      %34 = dma.done [#allocation7], 1024
    $region17: #{tpu_custom_call.1} parent=1 // pred_fallthru
      _
    %s36 = smul.u32 0, 16
    loop: start=0, step=1, limit=16
    $region18: #{tpu_custom_call.1} parent=1 // loop_pre_header
      _
    $region19: #{tpu_custom_call.1} parent=1 // loop_header
      %s38 = sphi 0, %s42
      %p39 = scmp.ge.s32.totalorder %s38, 16
    $region20: #{tpu_custom_call.1} parent=1 // loop_header_branch
      %41 = sbr.rel (%p39) target = $region24
    $region21: #{tpu_custom_call.1} parent=1 // loop_body
      %s43 = sadd.s32 %s36, %s38
      %s44 = sld [smem:[#allocation5 + %s43]]
      %s45 = smul.addr %s44, 16
      %s46 = scalar_lea.hbm %s2, %s45
      %s47 = scalar_lea.vmem [#allocation2], %s38
      %s48 = scalar_lea.sflag [#allocation3], %s38
      // Predicated region
      $region25: #{tpu_custom_call.1} parent=21 // pred_check
        _
      $region26: #{tpu_custom_call.1} parent=21 // pred_check_branch
        %50 = sbr.rel target = $region28
      $region27: #{tpu_custom_call.1} parent=21 // pred_region
        %51 = sst [smem:[#allocation12]] [#allocation11]
        %52 = sst [smem:[#allocation13]] [#allocation10]
      $region28: #{tpu_custom_call.1} parent=21 // pred_fallthru
        _
      %54 = shalt.err (0)
      %s56 = sshll.u32 %s47, 4
      %s57 = int_to_ptr.vmem [resolvable:$true] %s56
      %59 = dma.hbm_to_vmem [thread:$0]  %s46, 16, %s57, %s48
    $region22: #{tpu_custom_call.1} parent=1 // loop_footer
      %s42 = sadd.s32 1, %s38
    $region23: #{tpu_custom_call.1} parent=1 // loop_footer_branch
      %37 = sbr.rel target = $region19
    $region24: #{tpu_custom_call.1} parent=1 // loop_exit
      _
    loop: start=0, step=1, limit=16
    $region29: #{tpu_custom_call.1} parent=1 // loop_pre_header
      _
    $region30: #{tpu_custom_call.1} parent=1 // loop_header
      %s61 = sphi 0, %s65
      %p62 = scmp.ge.s32.totalorder %s61, 16
    $region31: #{tpu_custom_call.1} parent=1 // loop_header_branch
      %64 = sbr.rel (%p62) target = $region35
    $region32: #{tpu_custom_call.1} parent=1 // loop_body
      %s66 = scalar_lea.sflag [#allocation3], %s61
      %s67 = smul.u32 1, 1
      %s68 = sshll.u32 %s67, 4
      %69 = dma.done %s66, %s68
    $region33: #{tpu_custom_call.1} parent=1 // loop_footer
      %s65 = sadd.s32 1, %s61
    $region34: #{tpu_custom_call.1} parent=1 // loop_footer_branch
      %60 = sbr.rel target = $region30
    $region35: #{tpu_custom_call.1} parent=1 // loop_exit
      _
    %v70 = vld [vmem:[#allocation2] sm:$0xff]
    %v71 = vld [vmem:[#allocation2 + $0x8] sm:$0xff]
    %v72 = vpack.c.bf16 %v71, %v70
    %v73 = vld [vmem:[#allocation6] sm:$0xf]
    %v74 = vld [vmem:[#allocation6 + $0x4] sm:$0xf]
    %v75 = vld [vmem:[#allocation6 + $0x8] sm:$0xf]
    %v76 = vld [vmem:[#allocation6 + $0xc] sm:$0xf]
    %v77 = vld [vmem:[#allocation6 + $0x10] sm:$0xf]
    %v78 = vld [vmem:[#allocation6 + $0x14] sm:$0xf]
    %v79 = vld [vmem:[#allocation6 + $0x18] sm:$0xf]
    %v80 = vld [vmem:[#allocation6 + $0x1c] sm:$0xf]
    %v81 = vld [vmem:[#allocation6 + $0x20] sm:$0xf]
    %v82 = vld [vmem:[#allocation6 + $0x24] sm:$0xf]
    %v83 = vld [vmem:[#allocation6 + $0x28] sm:$0xf]
    %v84 = vld [vmem:[#allocation6 + $0x2c] sm:$0xf]
    %v85 = vld [vmem:[#allocation6 + $0x30] sm:$0xf]
    %v86 = vld [vmem:[#allocation6 + $0x34] sm:$0xf]
    %v87 = vld [vmem:[#allocation6 + $0x38] sm:$0xf]
    %v88 = vld [vmem:[#allocation6 + $0x3c] sm:$0xf]
    %v89 = vld [vmem:[%s4] sm:$0x1]
    %v91 = vlaneseq
    %v92 = vshrl.u32 %v91, 7
    %v93 = vsub.s32 0, %v92
    %v94 = vrot.slane %v89, %v93
    %v112 = vunpack.c.l.b16 %v73
    %v113 = vunpack.c.l.b16 %v74
    %v114 = vunpack.c.l.b16 %v75
    %v115 = vunpack.c.l.b16 %v76
    %v116 = vunpack.c.l.b16 %v77
    %v117 = vunpack.c.l.b16 %v78
    %v118 = vunpack.c.l.b16 %v79
    %v119 = vunpack.c.l.b16 %v80
    %v120 = vunpack.c.l.b16 %v81
    %v121 = vunpack.c.l.b16 %v82
    %v122 = vunpack.c.l.b16 %v83
    %v123 = vunpack.c.l.b16 %v84
    %v124 = vunpack.c.l.b16 %v85
    %v125 = vunpack.c.l.b16 %v86
    %v126 = vunpack.c.l.b16 %v87
    %v127 = vunpack.c.l.b16 %v88
    %v128 = vpack.c.b16 %v113, %v112
    %v129 = vpack.c.b16 %v115, %v114
    %v130 = vpack.c.b16 %v117, %v116
    %v131 = vpack.c.b16 %v119, %v118
    %v132 = vpack.c.b16 %v121, %v120
    %v133 = vpack.c.b16 %v123, %v122
    %v134 = vpack.c.b16 %v125, %v124
    %v135 = vpack.c.b16 %v127, %v126
    %144 = vmatprep.subr.bf16.mxu0 0
    %145 = vmatpush1.bf16.msra.mxu0 %v128
    %146 = vmatprep.subr.bf16.mxu0 0
    %147 = vmatpush1.bf16.msra.mxu0 %v129
    %148 = vmatprep.subr.bf16.mxu0 0
    %149 = vmatpush1.bf16.msra.mxu0 %v130
    %150 = vmatprep.subr.bf16.mxu0 0
    %151 = vmatpush1.bf16.msra.mxu0 %v131
    %152 = vmatprep.subr.bf16.mxu0 0
    %153 = vmatpush1.bf16.msra.mxu0 %v132
    %154 = vmatprep.subr.bf16.mxu0 0
    %155 = vmatpush1.bf16.msra.mxu0 %v133
    %156 = vmatprep.subr.bf16.mxu0 0
    %157 = vmatpush1.bf16.msra.mxu0 %v134
    %158 = vmatprep.subr.bf16.mxu0 0
    %159 = vmatpush1.bf16.msra.mxu0 %v135
    %160 = vmatprep.subr.bf16.mxu0 0
    %161 = vmatpush1.bf16.msra.mxu0 0
    %162 = vmatprep.subr.bf16.mxu0 0
    %163 = vmatpush1.bf16.msra.mxu0 0
    %164 = vmatprep.subr.bf16.mxu0 0
    %165 = vmatpush1.bf16.msra.mxu0 0
    %166 = vmatprep.subr.bf16.mxu0 0
    %167 = vmatpush1.bf16.msra.mxu0 0
    %168 = vmatprep.subr.bf16.mxu0 0
    %169 = vmatpush1.bf16.msra.mxu0 0
    %170 = vmatprep.subr.bf16.mxu0 0
    %171 = vmatpush1.bf16.msra.mxu0 0
    %172 = vmatprep.subr.bf16.mxu0 0
    %173 = vmatpush1.bf16.msra.mxu0 0
    %174 = vmatprep.subr.bf16.mxu0 0
    %175 = vmatpush1.bf16.msra.mxu0 0
    %176 = vmatprep.mubr.bf16.mxu0 0
    %177 = vmatmul.mubr.bf16.gmra.mrb[0].mxu0 %v72
    %v178 = vpop.f32.mrb[0].mxu0
    %v179 = vadd.f32 %v94, %v178
    %v180 = vpop.f32.mrb[0].mxu0
    %v181 = vpop.f32.mrb[0].mxu0
    %v182 = vadd.f32 %v94, %v181
    %v183 = vpop.f32.mrb[0].mxu0
    %184 = vdwg.mxu0
    %v185 = vtanh.pop %v179
    %v186 = vtanh.pop %v182
    %v187 = vpack.c.bf16 %v186, %v185
    %v188 = vld [vmem:[%s1] sm:$0x1]
    %vm189 = vcmask 130048
    %v191 = vsel %vm189, %v188, 0
    %193 = vmatprep.subr.bf16.mxu0 0
    %194 = vmatpush1.bf16.msra.mxu0 %v187
    %195 = vmatprep.subr.bf16.mxu0 0
    %196 = vmatpush1.bf16.msra.mxu0 0
    %197 = vmatprep.subr.bf16.mxu0 0
    %198 = vmatpush1.bf16.msra.mxu0 0
    %199 = vmatprep.subr.bf16.mxu0 0
    %200 = vmatpush1.bf16.msra.mxu0 0
    %201 = vmatprep.subr.bf16.mxu0 0
    %202 = vmatpush1.bf16.msra.mxu0 0
    %203 = vmatprep.subr.bf16.mxu0 0
    %204 = vmatpush1.bf16.msra.mxu0 0
    %205 = vmatprep.subr.bf16.mxu0 0
    %206 = vmatpush1.bf16.msra.mxu0 0
    %207 = vmatprep.subr.bf16.mxu0 0
    %208 = vmatpush1.bf16.msra.mxu0 0
    %209 = vmatprep.subr.bf16.mxu0 0
    %210 = vmatpush1.bf16.msra.mxu0 0
    %211 = vmatprep.subr.bf16.mxu0 0
    %212 = vmatpush1.bf16.msra.mxu0 0
    %213 = vmatprep.subr.bf16.mxu0 0
    %214 = vmatpush1.bf16.msra.mxu0 0
    %215 = vmatprep.subr.bf16.mxu0 0
    %216 = vmatpush1.bf16.msra.mxu0 0
    %217 = vmatprep.subr.bf16.mxu0 0
    %218 = vmatpush1.bf16.msra.mxu0 0
    %219 = vmatprep.subr.bf16.mxu0 0
    %220 = vmatpush1.bf16.msra.mxu0 0
    %221 = vmatprep.subr.bf16.mxu0 0
    %222 = vmatpush1.bf16.msra.mxu0 0
    %223 = vmatprep.subr.bf16.mxu0 0
    %224 = vmatpush1.bf16.msra.mxu0 0
    %225 = vmatprep.mubr.bf16.mxu0 0
    %226 = vmatmul.mubr.bf16.gmra.mrb[0].mxu0 %v191
    %v227 = vpop.f32.mrb[0].mxu0
    %v228 = vadd.f32 0.0, %v227
    %v229 = vpop.f32.mrb[0].mxu0
    %v230 = vpop.f32.mrb[0].mxu0
    %v231 = vpop.f32.mrb[0].mxu0
    %232 = vdwg.mxu0
    %v233 = vmul.f32 %v228, %v228
    %vm234 = vcmask 1041408
    %v235 = vsel %vm234, %v233, 0.0
    %236 = vadd.xlane.f32.xlu0 %v235
    %v237 = vpop.xlane.xlu0 %236
    %v238 = vmax.f32 %v237, 1e-24
    %v239 = vrsqrt.pop %v238
    %v240 = vmul.f32 %v228, %v239
    %241 = vst [vmem:[#allocation9] sm:$0x3] %v240
    // Predicated region
    $region36: #{tpu_custom_call.1} parent=1 // pred_check
      _
    $region37: #{tpu_custom_call.1} parent=1 // pred_check_branch
      %243 = sbr.rel (0) target = $region39
    $region38: #{tpu_custom_call.1} parent=1 // pred_region
      %s245 = ssub.s32 32, 32
      %246 = vsyncadd [#allocation8], %s245
      %s248 = sshll.u32 [#allocation9], 4
      %s249 = int_to_ptr.vmem [resolvable:$true] %s248
      %251 = dma.vmem_to_hbm [thread:$0]  %s249, 32, %s5, [#allocation8]
    $region39: #{tpu_custom_call.1} parent=1 // pred_fallthru
      _
    // Predicated region
    $region40: #{tpu_custom_call.1} parent=1 // pred_check
      _
    $region41: #{tpu_custom_call.1} parent=1 // pred_check_branch
      %253 = sbr.rel (0) target = $region43
    $region42: #{tpu_custom_call.1} parent=1 // pred_region
      %254 = dma.done [#allocation8], 32
    $region43: #{tpu_custom_call.1} parent=1 // pred_fallthru
      _
    %255 = vsyncpa [#allocation7], 1
    %256 = vsyncpa [#allocation8], 1
  %257 = vsyncmov [#allocation3]
  %s258 = vpop.sfrf %257
  %p259 = scmp.eq.s32.totalorder %s258, 0
  %p260 = pneg %p259
  %262 = shalt.err (%p260)
  %s263 = scalar_lea.sflag [#allocation3], 1
  %264 = vsyncmov %s263
  %s265 = vpop.sfrf %264
  %p266 = scmp.eq.s32.totalorder %s265, 0
  %p267 = pneg %p266
  %269 = shalt.err (%p267)
  %s270 = scalar_lea.sflag [#allocation3], 2
  %271 = vsyncmov %s270
  %s272 = vpop.sfrf %271
  %p273 = scmp.eq.s32.totalorder %s272, 0
  %p274 = pneg %p273
  %276 = shalt.err (%p274)
  %s277 = scalar_lea.sflag [#allocation3], 3
  %278 = vsyncmov %s277
  %s279 = vpop.sfrf %278
  %p280 = scmp.eq.s32.totalorder %s279, 0
  %p281 = pneg %p280
  %283 = shalt.err (%p281)
  %s284 = scalar_lea.sflag [#allocation3], 4
  %285 = vsyncmov %s284
  %s286 = vpop.sfrf %285
  %p287 = scmp.eq.s32.totalorder %s286, 0
  %p288 = pneg %p287
  %290 = shalt.err (%p288)
  %s291 = scalar_lea.sflag [#allocation3], 5
  %292 = vsyncmov %s291
  %s293 = vpop.sfrf %292
  %p294 = scmp.eq.s32.totalorder %s293, 0
  %p295 = pneg %p294
  %297 = shalt.err (%p295)
  %s298 = scalar_lea.sflag [#allocation3], 6
  %299 = vsyncmov %s298
  %s300 = vpop.sfrf %299
  %p301 = scmp.eq.s32.totalorder %s300, 0
  %p302 = pneg %p301
  %304 = shalt.err (%p302)
  %s305 = scalar_lea.sflag [#allocation3], 7
  %306 = vsyncmov %s305
  %s307 = vpop.sfrf %306
  %p308 = scmp.eq.s32.totalorder %s307, 0
  %p309 = pneg %p308
  %311 = shalt.err (%p309)
  %s312 = scalar_lea.sflag [#allocation3], 8
  %313 = vsyncmov %s312
  %s314 = vpop.sfrf %313
  %p315 = scmp.eq.s32.totalorder %s314, 0
  %p316 = pneg %p315
  %318 = shalt.err (%p316)
  %s319 = scalar_lea.sflag [#allocation3], 9
  %320 = vsyncmov %s319
  %s321 = vpop.sfrf %320
  %p322 = scmp.eq.s32.totalorder %s321, 0
  %p323 = pneg %p322
  %325 = shalt.err (%p323)
  %s326 = scalar_lea.sflag [#allocation3], 10
  %327 = vsyncmov %s326
  %s328 = vpop.sfrf %327
  %p329 = scmp.eq.s32.totalorder %s328, 0
  %p330 = pneg %p329
  %332 = shalt.err (%p330)
  %s333 = scalar_lea.sflag [#allocation3], 11
  %334 = vsyncmov %s333
  %s335 = vpop.sfrf %334
  %p336 = scmp.eq.s32.totalorder %s335, 0
  %p337 = pneg %p336
  %339 = shalt.err (%p337)
  %s340 = scalar_lea.sflag [#allocation3], 12
  %341 = vsyncmov %s340
  %s342 = vpop.sfrf %341
  %p343 = scmp.eq.s32.totalorder %s342, 0
  %p344 = pneg %p343
  %346 = shalt.err (%p344)
  %s347 = scalar_lea.sflag [#allocation3], 13
  %348 = vsyncmov %s347
  %s349 = vpop.sfrf %348
  %p350 = scmp.eq.s32.totalorder %s349, 0
  %p351 = pneg %p350
  %353 = shalt.err (%p351)
  %s354 = scalar_lea.sflag [#allocation3], 14
  %355 = vsyncmov %s354
  %s356 = vpop.sfrf %355
  %p357 = scmp.eq.s32.totalorder %s356, 0
  %p358 = pneg %p357
  %360 = shalt.err (%p358)
  %s361 = scalar_lea.sflag [#allocation3], 15
  %362 = vsyncmov %s361
  %s363 = vpop.sfrf %362
  %p364 = scmp.eq.s32.totalorder %s363, 0
  %p365 = pneg %p364
  %367 = shalt.err (%p365)

</llo_original>
